<compile_context>
chip_gen: v7x
topology: tpu7x:2x2x1
jax: 0.10.0
libtpu: 0.0.40
codegen_flags: <defaults>
</compile_context>

<pallas_src>
import functools

import jax
import jax.numpy as jnp
from jax import lax
from jax.experimental import pallas as pl
from jax.experimental.pallas import tpu as pltpu


EPS = 1e-5

# Per-grid-step sizing targets (input-block bytes).
_TARGET_BLOCK_BYTES = 1 << 20   # ~1 MiB per step: hides the ~0.35 us step overhead
_MAX_CBLOCK_BYTES = 1 << 20     # cap for a single (1, T, Ct) channel tile
_VMEM_LIMIT_BYTES = 32 << 20    # safe on v5e/v6e/v7x; plenty for these small blocks


# ----------------------------- tiling helpers ---------------------------------

def _choose_c_tile(T, C, itemsize):
    """Channel tile: a multiple of 128 dividing C, else the full C axis."""
    if C % 128 != 0:
        return C  # full axis (may be < 128 -> masked stores; see TODO above)
    best = 128
    for d in range(128, C + 1, 128):
        if C % d == 0 and T * d * itemsize <= _MAX_CBLOCK_BYTES:
            best = d
    return best


def _choose_b_tile(B, per_batch_bytes):
    """Batch tile: largest divisor of B keeping the block near the target size."""
    bt = 1
    for d in range(1, B + 1):
        if B % d == 0 and d * per_batch_bytes <= _TARGET_BLOCK_BYTES:
            bt = d
    return bt


def _tiles(B, T, C, itemsize):
    ct = _choose_c_tile(T, C, itemsize)
    bt = _choose_b_tile(B, T * ct * itemsize)
    return bt, ct


# ----------------------------- kernels ----------------------------------------

def _revin_norm_kernel(x_ref, y_ref, mean_ref, stdev_ref, *, eps, inv_t):
    # x_ref: (Bt, T, Ct) block
    x = x_ref[...]
    if x.dtype != jnp.float32:
        x = x.astype(jnp.float32)
    mean = jnp.sum(x, axis=1, keepdims=True) * inv_t          # (Bt, 1, Ct)
    centered = x - mean                                       # reused below
    var = jnp.sum(centered * centered, axis=1, keepdims=True) * inv_t
    # Exact sqrt for the stored stdev (keeps denorm round-trip exact).
    stdev_ref[...] = jnp.sqrt(var + eps).astype(stdev_ref.dtype)
    mean_ref[...] = mean.astype(mean_ref.dtype)
    # Per-channel rsqrt (EUP) + multiply instead of a per-element divide.
    inv_std = lax.rsqrt(var + eps)                            # (Bt, 1, Ct)
    y_ref[...] = (centered * inv_std).astype(y_ref.dtype)


def _revin_denorm_kernel(x_ref, mean_ref, stdev_ref, y_ref):
    x = x_ref[...]
    if x.dtype != jnp.float32:
        x = x.astype(jnp.float32)
    # Hoist the (Bt,1,Ct) stats to locals once per block.
    stdev = stdev_ref[...].astype(jnp.float32)
    mean = mean_ref[...].astype(jnp.float32)
    y_ref[...] = (x * stdev + mean).astype(y_ref.dtype)


# ----------------------------- wrappers ----------------------------------------

def revin_norm(x, eps=EPS):
    """Returns (x_normalized, mean, stdev)."""
    B, T, C = x.shape
    bt, ct = _tiles(B, T, C, x.dtype.itemsize)
    grid = (B // bt, C // ct)

    kernel = functools.partial(_revin_norm_kernel, eps=eps, inv_t=1.0 / T)
    return pl.pallas_call(
        kernel,
        out_shape=(
            jax.ShapeDtypeStruct((B, T, C), x.dtype),
            jax.ShapeDtypeStruct((B, 1, C), jnp.float32),
            jax.ShapeDtypeStruct((B, 1, C), jnp.float32),
        ),
        grid=grid,
        in_specs=[pl.BlockSpec((bt, T, ct), lambda b, c: (b, 0, c))],
        out_specs=(
            pl.BlockSpec((bt, T, ct), lambda b, c: (b, 0, c)),
            pl.BlockSpec((bt, 1, ct), lambda b, c: (b, 0, c)),
            pl.BlockSpec((bt, 1, ct), lambda b, c: (b, 0, c)),
        ),
        compiler_params=pltpu.CompilerParams(
            dimension_semantics=("parallel", "parallel"),
            vmem_limit_bytes=_VMEM_LIMIT_BYTES,
        ),
    )(x)


def revin_denorm(x, mean, stdev):
    """Returns x * stdev + mean (inverse of revin_norm)."""
    B, T, C = x.shape
    bt, ct = _tiles(B, T, C, x.dtype.itemsize)
    grid = (B // bt, C // ct)

    return pl.pallas_call(
        _revin_denorm_kernel,
        out_shape=jax.ShapeDtypeStruct((B, T, C), x.dtype),
        grid=grid,
        in_specs=[
            pl.BlockSpec((bt, T, ct), lambda b, c: (b, 0, c)),
            pl.BlockSpec((bt, 1, ct), lambda b, c: (b, 0, c)),
            pl.BlockSpec((bt, 1, ct), lambda b, c: (b, 0, c)),
        ],
        out_specs=pl.BlockSpec((bt, T, ct), lambda b, c: (b, 0, c)),
        compiler_params=pltpu.CompilerParams(
            dimension_semantics=("parallel", "parallel"),
            vmem_limit_bytes=_VMEM_LIMIT_BYTES,
        ),
    )(x, mean, stdev)


class RevIN:
    """Stateful wrapper mirroring the PyTorch module's forward(x, mode)."""

    def __init__(self, eps=1e-5, subtract_last=False, t_dim=1):
        assert not subtract_last, "subtract_last=True not implemented"
        assert t_dim == 1, "only t_dim=1 supported"
        self.eps = eps
        self.mean = None
        self.stdev = None

    def __call__(self, x, mode: str):
        if mode == "norm":
            y, self.mean, self.stdev = revin_norm(x, self.eps)
            return y
        elif mode == "denorm":
            return revin_denorm(x, self.mean, self.stdev)
        else:
            raise NotImplementedError(mode)


# ----------------------------- reference + test ---------------------------------

def _ref_norm(x, eps=EPS):
    mean = jnp.mean(x, axis=1, keepdims=True)
    var = jnp.var(x, axis=1, keepdims=True)  # biased (ddof=0) == unbiased=False
    stdev = jnp.sqrt(var + eps)
    return (x - mean) / stdev, mean, stdev


def _run_case(key, B, T, C):
    x = jax.random.normal(key, (B, T, C), dtype=jnp.float32) * 3.0 + 1.5

    revin = RevIN(eps=EPS, subtract_last=False, t_dim=1)

    y = jax.block_until_ready(revin(x, "norm"))
    x_rec = jax.block_until_ready(revin(y, "denorm"))

    y_ref, mean_ref, stdev_ref = _ref_norm(x, EPS)
    assert jnp.allclose(revin.mean, mean_ref, atol=1e-5, rtol=1e-5), "mean mismatch"
    assert jnp.allclose(revin.stdev, stdev_ref, atol=1e-5, rtol=1e-5), "stdev mismatch"
    assert jnp.allclose(y, y_ref, atol=1e-4, rtol=1e-4), "norm mismatch"
    assert jnp.allclose(x_rec, x, atol=1e-4, rtol=1e-4), "denorm round-trip mismatch"


if __name__ == "__main__":
    key = jax.random.PRNGKey(0)
    k1, k2 = jax.random.split(key)

    # Small shape matching typical time-series RevIN usage (C < 128 path).
    _run_case(k1, B=2, T=8, C=32)

    # Lane-dense path (C multiple of 128) exercising the channel/batch tiling.
    _run_case(k2, B=4, T=16, C=256)

    print("KERNEL_OK")
</pallas_src>

<mosaic_0001>
module attributes {stable_mosaic.version = 11 : i64} {
  func.func @_revin_norm_kernel(%arg0: i32, %arg1: i32, %arg2: memref<2x8x32xf32, #tpu.memory_space<vmem>>, %arg3: memref<2x8x32xf32, #tpu.memory_space<vmem>>, %arg4: memref<2x1x32xf32, #tpu.memory_space<vmem>>, %arg5: memref<2x1x32xf32, #tpu.memory_space<vmem>>) attributes {dimension_semantics = [#tpu.dimension_semantics<parallel>, #tpu.dimension_semantics<parallel>], iteration_bounds = array<i64: 1, 1>, scalar_prefetch = 0 : i64, scratch_operands = 0 : i64, tpu.core_type = #tpu.core_type<tc>, window_params = [{transform_indices = @transform_0, window_bounds = array<i64: 2, 8, 32>}, {transform_indices = @transform_1, window_bounds = array<i64: 2, 8, 32>}, {transform_indices = @transform_2, window_bounds = array<i64: 2, 1, 32>}, {transform_indices = @transform_3, window_bounds = array<i64: 2, 1, 32>}]} {
    %c0 = arith.constant 0 : index
    %c0_0 = arith.constant 0 : index
    %c0_1 = arith.constant 0 : index
    %0 = vector.load %arg2[%c0, %c0_0, %c0_1] : memref<2x8x32xf32, #tpu.memory_space<vmem>>, vector<2x8x32xf32>
    %cst = arith.constant dense<0.000000e+00> : vector<2x32xf32>
    %1 = vector.multi_reduction <add>, %0, %cst [1] : vector<2x8x32xf32> to vector<2x32xf32>
    %2 = vector.shape_cast %1 : vector<2x32xf32> to vector<2x1x32xf32>
    %cst_2 = arith.constant 1.250000e-01 : f32
    %3 = vector.broadcast %cst_2 : f32 to vector<2x1x32xf32>
    %4 = arith.mulf %2, %3 : vector<2x1x32xf32>
    %5 = vector.broadcast %4 : vector<2x1x32xf32> to vector<2x8x32xf32>
    %6 = arith.subf %0, %5 : vector<2x8x32xf32>
    %7 = arith.mulf %6, %6 : vector<2x8x32xf32>
    %cst_3 = arith.constant dense<0.000000e+00> : vector<2x32xf32>
    %8 = vector.multi_reduction <add>, %7, %cst_3 [1] : vector<2x8x32xf32> to vector<2x32xf32>
    %9 = vector.shape_cast %8 : vector<2x32xf32> to vector<2x1x32xf32>
    %cst_4 = arith.constant 1.250000e-01 : f32
    %10 = vector.broadcast %cst_4 : f32 to vector<2x1x32xf32>
    %11 = arith.mulf %9, %10 : vector<2x1x32xf32>
    %cst_5 = arith.constant 9.99999974E-6 : f32
    %12 = vector.broadcast %cst_5 : f32 to vector<2x1x32xf32>
    %13 = arith.addf %11, %12 : vector<2x1x32xf32>
    %14 = math.sqrt %13 : vector<2x1x32xf32>
    %c0_6 = arith.constant 0 : index
    %c0_7 = arith.constant 0 : index
    %c0_8 = arith.constant 0 : index
    %15 = vector.load %arg5[%c0_6, %c0_7, %c0_8] : memref<2x1x32xf32, #tpu.memory_space<vmem>>, vector<2x1x32xf32>
    tpu.vector_store %arg5[%c0_6, %c0_7, %c0_8], %14 {strides = array<i32>} : memref<2x1x32xf32, #tpu.memory_space<vmem>>, vector<2x1x32xf32>,
    %c0_9 = arith.constant 0 : index
    %c0_10 = arith.constant 0 : index
    %c0_11 = arith.constant 0 : index
    %16 = vector.load %arg4[%c0_9, %c0_10, %c0_11] : memref<2x1x32xf32, #tpu.memory_space<vmem>>, vector<2x1x32xf32>
    tpu.vector_store %arg4[%c0_9, %c0_10, %c0_11], %4 {strides = array<i32>} : memref<2x1x32xf32, #tpu.memory_space<vmem>>, vector<2x1x32xf32>,
    %cst_12 = arith.constant 9.99999974E-6 : f32
    %17 = vector.broadcast %cst_12 : f32 to vector<2x1x32xf32>
    %18 = arith.addf %11, %17 : vector<2x1x32xf32>
    %19 = math.rsqrt %18 : vector<2x1x32xf32>
    %20 = vector.broadcast %19 : vector<2x1x32xf32> to vector<2x8x32xf32>
    %21 = arith.mulf %6, %20 : vector<2x8x32xf32>
    %c0_13 = arith.constant 0 : index
    %c0_14 = arith.constant 0 : index
    %c0_15 = arith.constant 0 : index
    %22 = vector.load %arg3[%c0_13, %c0_14, %c0_15] : memref<2x8x32xf32, #tpu.memory_space<vmem>>, vector<2x8x32xf32>
    tpu.vector_store %arg3[%c0_13, %c0_14, %c0_15], %21 {strides = array<i32>} : memref<2x8x32xf32, #tpu.memory_space<vmem>>, vector<2x8x32xf32>,
    return
  }
  func.func @transform_0(%arg0: i32, %arg1: i32) -> (i32, i32, i32) {
    %c0_i32 = arith.constant 0 : i32
    %c0_i32_0 = arith.constant 0 : i32
    return %arg0, %c0_i32, %arg1 : i32, i32, i32
  }
  func.func @transform_1(%arg0: i32, %arg1: i32) -> (i32, i32, i32) {
    %c0_i32 = arith.constant 0 : i32
    %c0_i32_0 = arith.constant 0 : i32
    return %arg0, %c0_i32, %arg1 : i32, i32, i32
  }
  func.func @transform_2(%arg0: i32, %arg1: i32) -> (i32, i32, i32) {
    %c0_i32 = arith.constant 0 : i32
    %c0_i32_0 = arith.constant 0 : i32
    return %arg0, %c0_i32, %arg1 : i32, i32, i32
  }
  func.func @transform_3(%arg0: i32, %arg1: i32) -> (i32, i32, i32) {
    %c0_i32 = arith.constant 0 : i32
    %c0_i32_0 = arith.constant 0 : i32
    return %arg0, %c0_i32, %arg1 : i32, i32, i32
  }
}

</mosaic_0001>

<llo_original>
// kernel: tpu_custom_call.1
$region0: #{tpu_custom_call.1}
  #allocation0 [shape = 'u32[]', space=smem, size = 0x4, offset = 0x4, fixed_abs, tag = 'smem constant byte address 0x4 - core index']
  #allocation1 [shape = 'u32[144,128]{1,0:T(1,128)}', space=vmem, size = 0x12000, scoped, tag = 'internal scratch']
  %s0 = inlined_call_operand.hbm [shape: f32[2,8,32], index: 0, kind: input, shape index: {}]
  %s1 = inlined_call_operand.hbm [shape: f32[2,8,32], index: 1, kind: output, shape index: {0}]
  %s2 = inlined_call_operand.hbm [shape: f32[2,1,32], index: 2, kind: output, shape index: {1}]
  %s3 = inlined_call_operand.hbm [shape: f32[2,1,32], index: 3, kind: output, shape index: {2}]
  %4 = xla_tuple %s1, %s2, %s3
  %s5 = sld [smem:[#allocation0]]
  $region34: #{tpu_custom_call.1} parent=0
    _
  %s7 = ssub.s32 1, %s5
  %s8 = scalar_select 0, %s7, %s5
  $region1: #{tpu_custom_call.1} parent=0
    #allocation2 [shape = 'u8[8192]{0}', space=vmem, size = 0x2000, scoped, tag = 'input window, operand 0, single buffered']
    #allocation3 [shape = 's32[1]{0}', space=sflag, size = 0x4, scoped, tag = 'scoped memory for tpu_custom_call.1']
    #allocation4 [shape = 's32[1]{0}', space=sflag, size = 0x4, scoped, tag = 'scoped memory for tpu_custom_call.1']
    #allocation5 [shape = 'u8[8192]{0}', space=vmem, size = 0x2000, scoped, tag = 'output window, operand 0, single buffered']
    #allocation6 [shape = 'u8[1024]{0}', space=vmem, size = 0x400, scoped, tag = 'output window, operand 1, single buffered']
    #allocation7 [shape = 's32[1]{0}', space=sflag, size = 0x4, scoped, tag = 'scoped memory for tpu_custom_call.1']
    #allocation8 [shape = 'u8[1024]{0}', space=vmem, size = 0x400, scoped, tag = 'output window, operand 2, single buffered']
    %9 = vsyncpa [#allocation3], 0
    %10 = vsyncpa [#allocation4], 0
    %11 = vsyncpa [#allocation7], 0
    // Predicated region
    $region2: #{tpu_custom_call.1} parent=1 // pred_check
      _
    $region3: #{tpu_custom_call.1} parent=1 // pred_check_branch
      %13 = sbr.rel (0) target = $region5
    $region4: #{tpu_custom_call.1} parent=1 // pred_region
      %s15 = ssub.s32 256, 256
      %16 = vsyncadd [#allocation3], %s15
      %s17 = sshll.u32 [#allocation2], 4
      %s18 = int_to_ptr.vmem [resolvable:$true] %s17
      %23 = dma.hbm_to_vmem [thread:$0]  %s0, 256, %s18, [#allocation3], 128, 128, 8
    $region5: #{tpu_custom_call.1} parent=1 // pred_fallthru
      _
    // Predicated region
    $region6: #{tpu_custom_call.1} parent=1 // pred_check
      _
    $region7: #{tpu_custom_call.1} parent=1 // pred_check_branch
      %25 = sbr.rel (0) target = $region9
    $region8: #{tpu_custom_call.1} parent=1 // pred_region
      %26 = dma.done [#allocation3], 256
    $region9: #{tpu_custom_call.1} parent=1 // pred_fallthru
      _
    %v27 = vld [vmem:[#allocation2] sm:$0xff]
    %v28 = vld [vmem:[#allocation2 + $0x8] sm:$0xff]
    %vm29 = vcmask 261120
    %v30 = vsel %vm29, %v27, 0.0
    %v31 = vrot.slane %v30, 4
    %v32 = vadd.f32 %v30, %v31
    %v33 = vrot.slane %v32, 2
    %v34 = vadd.f32 %v32, %v33
    %v35 = vrot.slane %v34, 1
    %v36 = vadd.f32 %v34, %v35
    %v37 = vsel %vm29, %v28, 0.0
    %v38 = vrot.slane %v37, 4
    %v39 = vadd.f32 %v37, %v38
    %v40 = vrot.slane %v39, 2
    %v41 = vadd.f32 %v39, %v40
    %v42 = vrot.slane %v41, 1
    %v43 = vadd.f32 %v41, %v42
    %v44 = vmul.f32 %v36, 0.125
    %v45 = vmul.f32 %v43, 0.125
    %v46 = vsub.f32 %v27, %v44
    %v47 = vsub.f32 %v28, %v45
    %v48 = vmul.f32 %v46, %v46
    %v49 = vmul.f32 %v47, %v47
    %v50 = vsel %vm29, %v48, 0.0
    %v51 = vrot.slane %v50, 4
    %v52 = vadd.f32 %v50, %v51
    %v53 = vrot.slane %v52, 2
    %v54 = vadd.f32 %v52, %v53
    %v55 = vrot.slane %v54, 1
    %v56 = vadd.f32 %v54, %v55
    %v57 = vsel %vm29, %v49, 0.0
    %v58 = vrot.slane %v57, 4
    %v59 = vadd.f32 %v57, %v58
    %v60 = vrot.slane %v59, 2
    %v61 = vadd.f32 %v59, %v60
    %v62 = vrot.slane %v61, 1
    %v63 = vadd.f32 %v61, %v62
    %v64 = vmul.f32 %v56, 0.125
    %v65 = vmul.f32 %v63, 0.125
    %v66 = vadd.f32 %v64, 1e-05
    %v67 = vadd.f32 %v65, 1e-05
    %v68 = vrsqrt.pop %v66
    %v69 = vmul.f32 %v66, %v68
    %vm70 = vcmp.eq.f32.partialorder %v66, inf
    %v71 = vsel %vm70, %v66, %v69
    %vm72 = vcmp.eq.f32.partialorder %v66, 0.0
    %v73 = vand.u32 %v66, 2147483648
    %v74 = vsel %vm72, %v73, %v71
    %v75 = vrsqrt.pop %v67
    %v76 = vmul.f32 %v67, %v75
    %vm77 = vcmp.eq.f32.partialorder %v67, inf
    %v78 = vsel %vm77, %v67, %v76
    %vm79 = vcmp.eq.f32.partialorder %v67, 0.0
    %v80 = vand.u32 %v67, 2147483648
    %v81 = vsel %vm79, %v80, %v78
    %vm82 = vcmask 253952
    %83 = vst.msk [vmem:[#allocation8] sm:$0x1] %vm82, %v74
    %84 = vst.msk [vmem:[#allocation8 + $0x1] sm:$0x1] %vm82, %v81
    %85 = vst.msk [vmem:[#allocation6] sm:$0x1] %vm82, %v44
    %86 = vst.msk [vmem:[#allocation6 + $0x1] sm:$0x1] %vm82, %v45
    %v87 = vrsqrt.pop %v66
    %v88 = vrsqrt.pop %v67
    %v89 = vmul.f32 %v46, %v87
    %v90 = vmul.f32 %v47, %v88
    %91 = vst.msk [vmem:[#allocation5] sm:$0xff] %vm29, %v89
    %92 = vst.msk [vmem:[#allocation5 + $0x8] sm:$0xff] %vm29, %v90
    // Predicated region
    $region10: #{tpu_custom_call.1} parent=1 // pred_check
      _
    $region11: #{tpu_custom_call.1} parent=1 // pred_check_branch
      %94 = sbr.rel (0) target = $region13
    $region12: #{tpu_custom_call.1} parent=1 // pred_region
      %s96 = ssub.s32 256, 256
      %97 = vsyncadd [#allocation4], %s96
      %s98 = sshll.u32 [#allocation5], 4
      %s99 = int_to_ptr.vmem [resolvable:$true] %s98
      %104 = dma.vmem_to_hbm [thread:$0]  %s99, 256, %s1, [#allocation4], 128, 128, 8
    $region13: #{tpu_custom_call.1} parent=1 // pred_fallthru
      _
    // Predicated region
    $region14: #{tpu_custom_call.1} parent=1 // pred_check
      _
    $region15: #{tpu_custom_call.1} parent=1 // pred_check_branch
      %106 = sbr.rel (0) target = $region17
    $region16: #{tpu_custom_call.1} parent=1 // pred_region
      %s108 = ssub.s32 32, 32
      %109 = vsyncadd [#allocation7], %s108
      %s110 = sshll.u32 [#allocation6], 4
      %s111 = int_to_ptr.vmem [resolvable:$true] %s110
      %116 = dma.vmem_to_hbm [thread:$0]  %s111, 32, %s2, [#allocation7], 16, 16, 1
    $region17: #{tpu_custom_call.1} parent=1 // pred_fallthru
      _
    // Predicated region
    $region18: #{tpu_custom_call.1} parent=1 // pred_check
      _
    $region19: #{tpu_custom_call.1} parent=1 // pred_check_branch
      %118 = sbr.rel (0) target = $region21
    $region20: #{tpu_custom_call.1} parent=1 // pred_region
      %s120 = ssub.s32 32, 32
      %121 = vsyncadd [#allocation7], %s120
      %s122 = sshll.u32 [#allocation8], 4
      %s123 = int_to_ptr.vmem [resolvable:$true] %s122
      %128 = dma.vmem_to_hbm [thread:$0]  %s123, 32, %s3, [#allocation7], 16, 16, 1
    $region21: #{tpu_custom_call.1} parent=1 // pred_fallthru
      _
    // Predicated region
    $region22: #{tpu_custom_call.1} parent=1 // pred_check
      _
    $region23: #{tpu_custom_call.1} parent=1 // pred_check_branch
      %130 = sbr.rel (0) target = $region25
    $region24: #{tpu_custom_call.1} parent=1 // pred_region
      %131 = dma.done [#allocation4], 256
    $region25: #{tpu_custom_call.1} parent=1 // pred_fallthru
      _
    // Predicated region
    $region26: #{tpu_custom_call.1} parent=1 // pred_check
      _
    $region27: #{tpu_custom_call.1} parent=1 // pred_check_branch
      %133 = sbr.rel (0) target = $region29
    $region28: #{tpu_custom_call.1} parent=1 // pred_region
      %134 = dma.done [#allocation7], 32
    $region29: #{tpu_custom_call.1} parent=1 // pred_fallthru
      _
    // Predicated region
    $region30: #{tpu_custom_call.1} parent=1 // pred_check
      _
    $region31: #{tpu_custom_call.1} parent=1 // pred_check_branch
      %136 = sbr.rel (0) target = $region33
    $region32: #{tpu_custom_call.1} parent=1 // pred_region
      %137 = dma.done [#allocation7], 32
    $region33: #{tpu_custom_call.1} parent=1 // pred_fallthru
      _
    %138 = vsyncpa [#allocation3], 1
    %139 = vsyncpa [#allocation4], 1
    %140 = vsyncpa [#allocation7], 1

</llo_original>
